<compile_context>
chip_gen: v5e
topology: v5e:2x2
jax: 0.10.0
libtpu: 0.0.40
codegen_flags: <defaults>
</compile_context>

<pallas_src>
import jax
import jax.numpy as jnp
from jax.experimental import pallas as pl
from jax.experimental.pallas import tpu as pltpu


# ---------------------------------------------------------------------------
# Pallas kernel:  h = img @ w1_img + txt_bias[b];  relu;  out = h @ w2 + b2
# ---------------------------------------------------------------------------
def _decoder_kernel(img_ref, tb_ref, w1_ref, w2_ref, b2_ref, out_ref):
    # img_ref : (TM, Dv)    tile of image tokens for batch b
    # tb_ref  : (1, H)      per-batch text contribution + first-layer bias
    # w1_ref  : (Dv, H)     image half of the first Linear
    # w2_ref  : (H, Dout)   second Linear
    # b2_ref  : (1, Dout)
    # out_ref : (TM, Dout)
    h = jnp.dot(img_ref[...], w1_ref[...],
                preferred_element_type=jnp.float32) + tb_ref[...]
    h = jnp.maximum(h, 0.0)
    out = jnp.dot(h, w2_ref[...],
                  preferred_element_type=jnp.float32) + b2_ref[...]
    out_ref[...] = out.astype(out_ref.dtype)


def _default_tile_m():
    """Per-generation tile size: v7x has 64 MiB VMEM -> smaller cap."""
    try:
        kind = jax.devices()[0].device_kind.lower()
    except Exception:
        return 256
    if "v7" in kind:
        return 256
    return 512  # v5e / v6e (multiple of 128, fits comfortably in 128 MiB VMEM)


def clipseg_decoder(image_feat, text_feat, w1, b1, w2, b2, *, tile_m=None):
    """Decoder MLP over all tokens.

    image_feat: [B, N, Dv]   text_feat: [B, 1, Dt]
    w1: [Dv+Dt, H]  b1: [1, H]  w2: [H, Dout]  b2: [1, Dout]
    returns:    [B, N, Dout] (float32)
    """
    B, N, Dv = image_feat.shape
    Dt = text_feat.shape[-1]
    Din, Hd = w1.shape
    assert Din == Dv + Dt
    Dout = w2.shape[1]

    if tile_m is None:
        tile_m = _default_tile_m()

    # Clamp tile_m for tiny token counts and keep it a multiple of 8
    # (sublane constraint); pad N up so the grid covers everything.
    n_r8 = ((N + 7) // 8) * 8
    tile_m = max(8, min((tile_m // 8) * 8, n_r8))
    n_pad = pl.cdiv(N, tile_m) * tile_m
    if n_pad != N:
        image_feat = jnp.pad(image_feat, ((0, 0), (0, n_pad - N), (0, 0)))

    # Split the first Linear: image half stays in the kernel; the text half
    # plus b1 collapses to a per-batch bias computed once here (no HBM
    # broadcast of text tokens, no in-kernel concat).
    w1_img = w1[:Dv]                                   # (Dv, H)
    w1_txt = w1[Dv:]                                   # (Dt, H)
    txt_bias = (text_feat.reshape(B, Dt) @ w1_txt + b1).reshape(B, 1, Hd)

    grid = (B, n_pad // tile_m)

    out_pad = pl.pallas_call(
        _decoder_kernel,
        out_shape=jax.ShapeDtypeStruct((B, n_pad, Dout), jnp.float32),
        grid_spec=pltpu.PrefetchScalarGridSpec(
            num_scalar_prefetch=0,
            grid=grid,
            in_specs=[
                # image tokens: batch axis squeezed, tiled over tokens
                pl.BlockSpec((None, tile_m, Dv), lambda b, i: (b, i, 0)),
                # per-batch text bias (tiny, one row per batch)
                pl.BlockSpec((None, 1, Hd), lambda b, i: (b, 0, 0)),
                # grid-invariant weights (constant index_map -> fetched once
                # per buffer; kept at default buffering for robustness)
                pl.BlockSpec((Dv, Hd), lambda b, i: (0, 0)),
                pl.BlockSpec((Hd, Dout), lambda b, i: (0, 0)),
                pl.BlockSpec((1, Dout), lambda b, i: (0, 0)),
            ],
            out_specs=pl.BlockSpec((None, tile_m, Dout),
                                   lambda b, i: (b, i, 0)),
        ),
        compiler_params=pltpu.CompilerParams(
            dimension_semantics=("parallel", "parallel"),
        ),
    )(image_feat, txt_bias, w1_img, w2, b2)

    return out_pad[:, :N, :]


# ---------------------------------------------------------------------------
# Full CLIPSeg forward (decoder + patch-to-pixel unfolding), matching PyTorch.
# ---------------------------------------------------------------------------
def clipseg_forward(image_feat, text_feat, params, *, H, W, patch_size,
                    num_classes):
    B = image_feat.shape[0]
    decoded = clipseg_decoder(
        image_feat, text_feat,
        params["w1"], params["b1"], params["w2"], params["b2"],
    )  # [B, N, P*P*C]

    hp, wp, P, C = H // patch_size, W // patch_size, patch_size, num_classes
    decoded = decoded.reshape(B, hp, wp, P, P, C)
    # PyTorch: permute(0, 5, 1, 3, 2, 4) then view(B, C, H, W)
    decoded = jnp.transpose(decoded, (0, 5, 1, 3, 2, 4))
    logits = decoded.reshape(B, C, H, W)
    return {"logits": logits}


if __name__ == "__main__":
    # Small shapes consistent with the module's forward:
    #   patch_size=32, num_classes=2, use_text=True
    #   (real CLIP: vision_dim=768, text_dim=512, H=W=224 — scaled down here)
    B = 2
    H = W = 64                  # H//patch == 2 -> 4 patches per image
    patch_size = 32
    num_classes = 2
    vision_dim = 64
    text_dim = 32
    hidden = 128                # decoder hidden (512 in the original)
    d_out = patch_size * patch_size * num_classes      # 2048
    n_patches = (H // patch_size) * (W // patch_size)  # 4

    key = jax.random.PRNGKey(0)
    k_img, k_txt, k_w1, k_b1, k_w2, k_b2 = jax.random.split(key, 6)

    # Synthetic "backbone" features (stand-ins for CLIP vision/text outputs).
    image_feat = jax.random.normal(k_img, (B, n_patches, vision_dim), jnp.float32)
    text_feat = jax.random.normal(k_txt, (B, 1, text_dim), jnp.float32)

    # Decoder parameters (nn.Linear-style deterministic init).
    d_in = vision_dim + text_dim
    params = {
        "w1": jax.random.uniform(k_w1, (d_in, hidden), jnp.float32,
                                 -1.0 / d_in ** 0.5, 1.0 / d_in ** 0.5),
        "b1": jax.random.uniform(k_b1, (1, hidden), jnp.float32,
                                 -1.0 / d_in ** 0.5, 1.0 / d_in ** 0.5),
        "w2": jax.random.uniform(k_w2, (hidden, d_out), jnp.float32,
                                 -1.0 / hidden ** 0.5, 1.0 / hidden ** 0.5),
        "b2": jax.random.uniform(k_b2, (1, d_out), jnp.float32,
                                 -1.0 / hidden ** 0.5, 1.0 / hidden ** 0.5),
    }

    out = clipseg_forward(image_feat, text_feat, params,
                          H=H, W=W, patch_size=patch_size,
                          num_classes=num_classes)
    logits = jax.block_until_ready(out["logits"])
    assert logits.shape == (B, num_classes, H, W), logits.shape

    # Correctness check vs. plain-JAX reference of the decoder path
    # (concat form, exactly like the PyTorch module).
    feat_ref = jnp.concatenate(
        [image_feat, jnp.broadcast_to(text_feat, (B, n_patches, text_dim))],
        axis=-1)
    h_ref = jnp.maximum(feat_ref @ params["w1"] + params["b1"], 0.0)
    dec_ref = h_ref @ params["w2"] + params["b2"]
    dec_ref = dec_ref.reshape(B, H // patch_size, W // patch_size,
                              patch_size, patch_size, num_classes)
    logits_ref = jnp.transpose(dec_ref, (0, 5, 1, 3, 2, 4)).reshape(
        B, num_classes, H, W)
    assert jnp.allclose(logits, logits_ref, atol=1e-4, rtol=1e-4)

    print("KERNEL_OK")
</pallas_src>

<mosaic_0001>
module attributes {stable_mosaic.version = 11 : i64} {
  func.func @_decoder_kernel(%arg0: i32, %arg1: i32, %arg2: memref<1x8x64xf32, #tpu.memory_space<vmem>>, %arg3: memref<1x1x128xf32, #tpu.memory_space<vmem>>, %arg4: memref<64x128xf32, #tpu.memory_space<vmem>>, %arg5: memref<128x2048xf32, #tpu.memory_space<vmem>>, %arg6: memref<1x2048xf32, #tpu.memory_space<vmem>>, %arg7: memref<1x8x2048xf32, #tpu.memory_space<vmem>>) attributes {dimension_semantics = [#tpu.dimension_semantics<parallel>, #tpu.dimension_semantics<parallel>], iteration_bounds = array<i64: 2, 1>, scalar_prefetch = 0 : i64, scratch_operands = 0 : i64, tpu.core_type = #tpu.core_type<tc>, window_params = [{transform_indices = @transform_0, window_bounds = array<i64: 1, 8, 64>}, {transform_indices = @transform_1, window_bounds = array<i64: 1, 1, 128>}, {pipeline_mode = #tpu.pipeline_mode<synchronous>, transform_indices = @transform_2, window_bounds = array<i64: 64, 128>}, {pipeline_mode = #tpu.pipeline_mode<synchronous>, transform_indices = @transform_3, window_bounds = array<i64: 128, 2048>}, {pipeline_mode = #tpu.pipeline_mode<synchronous>, transform_indices = @transform_4, window_bounds = array<i64: 1, 2048>}, {transform_indices = @transform_5, window_bounds = array<i64: 1, 8, 2048>}]} {
    %c0 = arith.constant 0 : index
    %c0_0 = arith.constant 0 : index
    %c0_1 = arith.constant 0 : index
    %0 = vector.load %arg2[%c0, %c0_0, %c0_1] : memref<1x8x64xf32, #tpu.memory_space<vmem>>, vector<1x8x64xf32>
    %1 = vector.shape_cast %0 : vector<1x8x64xf32> to vector<8x64xf32>
    %c0_2 = arith.constant 0 : index
    %c0_3 = arith.constant 0 : index
    %2 = vector.load %arg4[%c0_2, %c0_3] : memref<64x128xf32, #tpu.memory_space<vmem>>, vector<64x128xf32>
    %cst = arith.constant dense<0.000000e+00> : vector<8x128xf32>
    %3 = tpu.matmul %1, %2, %cst {dimension_numbers = #tpu.dot_dimension_numbers<[1], [0], [0], [1], [0, 0, 1, 1], [], []>} : vector<8x64xf32>, vector<64x128xf32>, vector<8x128xf32> -> vector<8x128xf32>
    %c0_4 = arith.constant 0 : index
    %c0_5 = arith.constant 0 : index
    %c0_6 = arith.constant 0 : index
    %4 = vector.load %arg3[%c0_4, %c0_5, %c0_6] : memref<1x1x128xf32, #tpu.memory_space<vmem>>, vector<1x1x128xf32>
    %5 = vector.shape_cast %4 : vector<1x1x128xf32> to vector<1x128xf32>
    %6 = vector.broadcast %5 : vector<1x128xf32> to vector<8x128xf32>
    %7 = arith.addf %3, %6 : vector<8x128xf32>
    %cst_7 = arith.constant 0.000000e+00 : f32
    %8 = vector.broadcast %cst_7 : f32 to vector<8x128xf32>
    %9 = arith.maximumf %7, %8 : vector<8x128xf32>
    %c0_8 = arith.constant 0 : index
    %c0_9 = arith.constant 0 : index
    %10 = vector.load %arg5[%c0_8, %c0_9] : memref<128x2048xf32, #tpu.memory_space<vmem>>, vector<128x2048xf32>
    %cst_10 = arith.constant dense<0.000000e+00> : vector<8x2048xf32>
    %11 = tpu.matmul %9, %10, %cst_10 {dimension_numbers = #tpu.dot_dimension_numbers<[1], [0], [0], [1], [0, 0, 1, 1], [], []>} : vector<8x128xf32>, vector<128x2048xf32>, vector<8x2048xf32> -> vector<8x2048xf32>
    %c0_11 = arith.constant 0 : index
    %c0_12 = arith.constant 0 : index
    %12 = vector.load %arg6[%c0_11, %c0_12] : memref<1x2048xf32, #tpu.memory_space<vmem>>, vector<1x2048xf32>
    %13 = vector.broadcast %12 : vector<1x2048xf32> to vector<8x2048xf32>
    %14 = arith.addf %11, %13 : vector<8x2048xf32>
    %c0_13 = arith.constant 0 : index
    %c0_14 = arith.constant 0 : index
    %c0_15 = arith.constant 0 : index
    %15 = vector.load %arg7[%c0_13, %c0_14, %c0_15] : memref<1x8x2048xf32, #tpu.memory_space<vmem>>, vector<1x8x2048xf32>
    %16 = vector.shape_cast %15 : vector<1x8x2048xf32> to vector<8x2048xf32>
    %17 = vector.shape_cast %14 : vector<8x2048xf32> to vector<1x8x2048xf32>
    tpu.vector_store %arg7[%c0_13, %c0_14, %c0_15], %17 {strides = array<i32>} : memref<1x8x2048xf32, #tpu.memory_space<vmem>>, vector<1x8x2048xf32>,
    return
  }
  func.func @transform_0(%arg0: i32, %arg1: i32) -> (i32, i32, i32) {
    %c0_i32 = arith.constant 0 : i32
    %c0_i32_0 = arith.constant 0 : i32
    return %arg0, %arg1, %c0_i32 : i32, i32, i32
  }
  func.func @transform_1(%arg0: i32, %arg1: i32) -> (i32, i32, i32) {
    %c0_i32 = arith.constant 0 : i32
    %c0_i32_0 = arith.constant 0 : i32
    %c0_i32_1 = arith.constant 0 : i32
    return %arg0, %c0_i32, %c0_i32_0 : i32, i32, i32
  }
  func.func @transform_2(%arg0: i32, %arg1: i32) -> (i32, i32) {
    %c0_i32 = arith.constant 0 : i32
    %c0_i32_0 = arith.constant 0 : i32
    %c0_i32_1 = arith.constant 0 : i32
    return %c0_i32, %c0_i32_0 : i32, i32
  }
  func.func @transform_3(%arg0: i32, %arg1: i32) -> (i32, i32) {
    %c0_i32 = arith.constant 0 : i32
    %c0_i32_0 = arith.constant 0 : i32
    %c0_i32_1 = arith.constant 0 : i32
    return %c0_i32, %c0_i32_0 : i32, i32
  }
  func.func @transform_4(%arg0: i32, %arg1: i32) -> (i32, i32) {
    %c0_i32 = arith.constant 0 : i32
    %c0_i32_0 = arith.constant 0 : i32
    %c0_i32_1 = arith.constant 0 : i32
    return %c0_i32, %c0_i32_0 : i32, i32
  }
  func.func @transform_5(%arg0: i32, %arg1: i32) -> (i32, i32, i32) {
    %c0_i32 = arith.constant 0 : i32
    %c0_i32_0 = arith.constant 0 : i32
    return %arg0, %arg1, %c0_i32 : i32, i32, i32
  }
}

</mosaic_0001>

<llo_original>
// kernel: tpu_custom_call.1
$region0: #{tpu_custom_call.1}
  #allocation0 [shape = 'u32[]', space=smem, size = 0x4, offset = 0x4, fixed_abs, tag = 'smem constant byte address 0x4 - core index']
  #allocation1 [shape = 'u32[72,128]{1,0:T(1,128)}', space=vmem, size = 0x9000, scoped, tag = 'internal scratch']
  %s0 = inlined_call_operand.hbm [shape: f32[2,8,64], index: 0, kind: input, shape index: {}]
  %s1 = inlined_call_operand.hbm [shape: f32[2,1,128], index: 1, kind: input, shape index: {}]
  %s2 = inlined_call_operand.hbm [shape: f32[64,128], index: 2, kind: input, shape index: {}]
  %s3 = inlined_call_operand.hbm [shape: f32[128,2048], index: 3, kind: input, shape index: {}]
  %s4 = inlined_call_operand.hbm [shape: f32[1,2048], index: 4, kind: input, shape index: {}]
  %s5 = inlined_call_operand.hbm [shape: f32[2,8,2048], index: 5, kind: output, shape index: {}]
  %s6 = sld [smem:[#allocation0]]
  $region73: #{tpu_custom_call.1} parent=0
    _
  %s8 = ssub.s32 1, %s6
  %s9 = scalar_select 0, %s8, %s6
  $region1: #{tpu_custom_call.1} parent=0
    #allocation2 [shape = 'u8[8192]{0}', space=vmem, size = 0x2000, scoped, tag = 'input window, operand 0']
    #allocation3 [shape = 's32[2]{0}', space=sflag, size = 0x8, scoped, tag = 'scoped memory for tpu_custom_call.1']
    #allocation4 [shape = 's32[2]{0}', space=sflag, size = 0x8, scoped, tag = 'scoped memory for tpu_custom_call.1']
    #allocation5 [shape = 'u8[1024]{0}', space=vmem, size = 0x400, scoped, tag = 'input window, operand 1']
    #allocation6 [shape = 's32[2]{0}', space=sflag, size = 0x8, scoped, tag = 'scoped memory for tpu_custom_call.1']
    #allocation7 [shape = 'u8[32768]{0}', space=vmem, size = 0x8000, scoped, tag = 'input window, operand 2, single buffered']
    #allocation8 [shape = 'u8[1048576]{0}', space=vmem, size = 0x100000, scoped, tag = 'input window, operand 3, single buffered']
    #allocation9 [shape = 's32[1]{0}', space=sflag, size = 0x4, scoped, tag = 'scoped memory for tpu_custom_call.1']
    #allocation10 [shape = 'u8[8192]{0}', space=vmem, size = 0x2000, scoped, tag = 'input window, operand 4, single buffered']
    #allocation11 [shape = 'u8[131072]{0}', space=vmem, size = 0x20000, scoped, tag = 'output window, operand 0']
    %10 = vsyncpa [#allocation3], 0
    %s11 = scalar_lea.sflag [#allocation3], 1
    %12 = vsyncpa %s11, 0
    %13 = vsyncpa [#allocation6], 0
    %s14 = scalar_lea.sflag [#allocation6], 1
    %15 = vsyncpa %s14, 0
    %16 = vsyncpa [#allocation9], 0
    %17 = vsyncpa [#allocation4], 0
    %s18 = scalar_lea.sflag [#allocation4], 1
    %19 = vsyncpa %s18, 0
    loop: start=0, step=1, limit=4
    $region2: #{tpu_custom_call.1} parent=1 // loop_pre_header
      _
    $region3: #{tpu_custom_call.1} parent=1 // loop_header
      %s21 = sphi 0, %s25
      %p22 = scmp.ge.s32.totalorder %s21, 4
      %s28 = sphi 0, %s40
      %s29 = sphi 0, %s36
      %s30 = sphi 0, %s28
      %s31 = sphi 0, %s29
      %s32 = sphi 0, %s30
      %s33 = sphi 0, %s31
      %s45 = sphi 0, %s47
      %s48 = sphi 0, %s45
      %s49 = sphi 0, %s48
      %s65 = sphi 0, %s49
      %s71 = sphi 0, %s73
      %s74 = sphi 0, %s71
      %s75 = sphi 0, %s74
      %s91 = sphi 0, %s75
      %s95 = sphi 0, %s95
      %s97 = sphi 0, %s95
      %s98 = sphi 0, %s97
      %s112 = sphi 0, %s98
      %s116 = sphi 0, %s116
      %s118 = sphi 0, %s116
      %s119 = sphi 0, %s118
      %s133 = sphi 0, %s119
      %s137 = sphi 0, %s137
      %s139 = sphi 0, %s137
      %s140 = sphi 0, %s139
      %s154 = sphi 0, %s140
      %s162 = sphi 0, %s164
      %s165 = sphi 0, %s162
      %s166 = sphi 0, %s165
      %s182 = sphi 0, %s166
    $region4: #{tpu_custom_call.1} parent=1 // loop_header_branch
      %24 = sbr.rel (%p22) target = $region8
    $region5: #{tpu_custom_call.1} parent=1 // loop_body
      %s26 = ssub.s32 %s21, 1
      %s27 = ssub.s32 %s21, 2
      %s34 = sadd.s32 1, %s29
      %p35 = scmp.ge.s32.totalorder %s34, 1
      %s36 = scalar_select %p35, 0, %s34
      %s37 = sadd.s32 1, %s28
      %s38 = scalar_select %p35, %s37, %s28
      %p39 = scmp.ge.s32.totalorder %s38, 2
      %s40 = scalar_select %p39, 0, %s38
      %s41 = ssub.s32 %s28, %s40
      %s42 = ssub.s32 %s29, %s36
      %s43 = sor.u32 %s41, %s42
      %p44 = scmp.eq.s32.totalorder %s43, 0
      %s46 = sadd.s32 %s45, 1
      %s47 = scalar_select %p44, %s45, %s46
      %p50 = pneg %p44
      %p51 = scmp.eq.s32.totalorder %s21, 1
      %p52 = por %p50, %p51
      %p53 = scmp.ne.s32.totalorder %s45, %s48
      %p54 = scmp.eq.s32.totalorder %s21, 0
      %p55 = por %p53, %p54
      %p56 = scmp.ne.s32.totalorder %s45, %s48
      %p57 = scmp.eq.s32.totalorder %s26, 1
      %p58 = por %p56, %p57
      %p59 = scmp.ne.s32.totalorder %s48, %s49
      %p60 = scmp.eq.s32.totalorder %s26, 0
      %p61 = por %p59, %p60
      %p62 = scmp.ne.s32.totalorder %s48, %s49
      %p63 = scmp.eq.s32.totalorder %s27, 1
      %p64 = por %p62, %p63
      %p66 = scmp.ne.s32.totalorder %s49, %s65
      %p67 = scmp.eq.s32.totalorder %s27, 0
      %p68 = por %p66, %p67
      %s69 = ssub.s32 %s28, %s40
      %p70 = scmp.eq.s32.totalorder %s69, 0
      %s72 = sadd.s32 %s71, 1
      %s73 = scalar_select %p70, %s71, %s72
      %p76 = pneg %p70
      %p77 = scmp.eq.s32.totalorder %s21, 1
      %p78 = por %p76, %p77
      %p79 = scmp.ne.s32.totalorder %s71, %s74
      %p80 = scmp.eq.s32.totalorder %s21, 0
      %p81 = por %p79, %p80
      %p82 = scmp.ne.s32.totalorder %s71, %s74
      %p83 = scmp.eq.s32.totalorder %s26, 1
      %p84 = por %p82, %p83
      %p85 = scmp.ne.s32.totalorder %s74, %s75
      %p86 = scmp.eq.s32.totalorder %s26, 0
      %p87 = por %p85, %p86
      %p88 = scmp.ne.s32.totalorder %s74, %s75
      %p89 = scmp.eq.s32.totalorder %s27, 1
      %p90 = por %p88, %p89
      %p92 = scmp.ne.s32.totalorder %s75, %s91
      %p93 = scmp.eq.s32.totalorder %s27, 0
      %p94 = por %p92, %p93
      %s96 = sadd.s32 %s95, 1
      %p99 = scmp.eq.s32.totalorder %s21, 1
      %p100 = scmp.ne.s32.totalorder %s95, %s97
      %p101 = scmp.eq.s32.totalorder %s21, 0
      %p102 = por %p100, %p101
      %p103 = scmp.ne.s32.totalorder %s95, %s97
      %p104 = scmp.eq.s32.totalorder %s26, 1
      %p105 = por %p103, %p104
      %p106 = scmp.ne.s32.totalorder %s97, %s98
      %p107 = scmp.eq.s32.totalorder %s26, 0
      %p108 = por %p106, %p107
      %p109 = scmp.ne.s32.totalorder %s97, %s98
      %p110 = scmp.eq.s32.totalorder %s27, 1
      %p111 = por %p109, %p110
      %p113 = scmp.ne.s32.totalorder %s98, %s112
      %p114 = scmp.eq.s32.totalorder %s27, 0
      %p115 = por %p113, %p114
      %s117 = sadd.s32 %s116, 1
      %p120 = scmp.eq.s32.totalorder %s21, 1
      %p121 = scmp.ne.s32.totalorder %s116, %s118
      %p122 = scmp.eq.s32.totalorder %s21, 0
      %p123 = por %p121, %p122
      %p124 = scmp.ne.s32.totalorder %s116, %s118
      %p125 = scmp.eq.s32.totalorder %s26, 1
      %p126 = por %p124, %p125
      %p127 = scmp.ne.s32.totalorder %s118, %s119
      %p128 = scmp.eq.s32.totalorder %s26, 0
      %p129 = por %p127, %p128
      %p130 = scmp.ne.s32.totalorder %s118, %s119
      %p131 = scmp.eq.s32.totalorder %s27, 1
      %p132 = por %p130, %p131
      %p134 = scmp.ne.s32.totalorder %s119, %s133
      %p135 = scmp.eq.s32.totalorder %s27, 0
      %p136 = por %p134, %p135
      %s138 = sadd.s32 %s137, 1
      %p141 = scmp.eq.s32.totalorder %s21, 1
      %p142 = scmp.ne.s32.totalorder %s137, %s139
      %p143 = scmp.eq.s32.totalorder %s21, 0
      %p144 = por %p142, %p143
      %p145 = scmp.ne.s32.totalorder %s137, %s139
      %p146 = scmp.eq.s32.totalorder %s26, 1
      %p147 = por %p145, %p146
      %p148 = scmp.ne.s32.totalorder %s139, %s140
      %p149 = scmp.eq.s32.totalorder %s26, 0
      %p150 = por %p148, %p149
      %p151 = scmp.ne.s32.totalorder %s139, %s140
      %p152 = scmp.eq.s32.totalorder %s27, 1
      %p153 = por %p151, %p152
      %p155 = scmp.ne.s32.totalorder %s140, %s154
      %p156 = scmp.eq.s32.totalorder %s27, 0
      %p157 = por %p155, %p156
      %s158 = ssub.s32 %s28, %s40
      %s159 = ssub.s32 %s29, %s36
      %s160 = sor.u32 %s158, %s159
      %p161 = scmp.eq.s32.totalorder %s160, 0
      %s163 = sadd.s32 %s162, 1
      %s164 = scalar_select %p161, %s162, %s163
      %p167 = pneg %p161
      %p168 = scmp.eq.s32.totalorder %s21, 1
      %p169 = por %p167, %p168
      %p170 = scmp.ne.s32.totalorder %s162, %s165
      %p171 = scmp.eq.s32.totalorder %s21, 0
      %p172 = por %p170, %p171
      %p173 = scmp.ne.s32.totalorder %s162, %s165
      %p174 = scmp.eq.s32.totalorder %s26, 1
      %p175 = por %p173, %p174
      %p176 = scmp.ne.s32.totalorder %s165, %s166
      %p177 = scmp.eq.s32.totalorder %s26, 0
      %p178 = por %p176, %p177
      %p179 = scmp.ne.s32.totalorder %s165, %s166
      %p180 = scmp.eq.s32.totalorder %s27, 1
      %p181 = por %p179, %p180
      %p183 = scmp.ne.s32.totalorder %s166, %s182
      %p184 = scmp.eq.s32.totalorder %s27, 0
      %p185 = por %p183, %p184
      %p186 = scmp.le.s32.totalorder 1, %s21
      %p187 = scmp.lt.s32.totalorder %s21, 3
      %p188 = pnand %p186, %p187
      %p189 = pneg %p188
      // Predicated region
      $region9: #{tpu_custom_call.1} parent=5 // pred_check
        _
      $region10: #{tpu_custom_call.1} parent=5 // pred_check_branch
        %191 = sbr.rel (%p188) target = $region12
      $region11: #{tpu_custom_call.1} parent=5 // pred_region
        %s192 = ssub.s32 %s21, 1
        // Predicated region
        $region13: #{tpu_custom_call.1} parent=11 // pred_check
          %p193 = pneg %p108
        $region14: #{tpu_custom_call.1} parent=11 // pred_check_branch
          %195 = sbr.rel (%p193) target = $region16
        $region15: #{tpu_custom_call.1} parent=11 // pred_region
          %197 = vsyncadd [#allocation6], 0
          %s198 = sshll.u32 %s2, 4
          %s199 = int_to_ptr.hbm [resolvable:$true] %s198
          %s200 = sshll.u32 [#allocation7], 4
          %s201 = int_to_ptr.vmem [resolvable:$true] %s200
          %206 = dma.hbm_to_vmem [thread:$0]  %s199, 1024, %s201, [#allocation6], 128, 128, 8
        $region16: #{tpu_custom_call.1} parent=11 // pred_fallthru
          _
        // Predicated region
        $region17: #{tpu_custom_call.1} parent=11 // pred_check
          %p207 = pneg %p129
        $region18: #{tpu_custom_call.1} parent=11 // pred_check_branch
          %209 = sbr.rel (%p207) target = $region20
        $region19: #{tpu_custom_call.1} parent=11 // pred_region
          %211 = vsyncadd [#allocation9], 0
          %s212 = sshll.u32 %s3, 4
          %s213 = int_to_ptr.hbm [resolvable:$true] %s212
          %s214 = sshll.u32 [#allocation8], 4
          %s215 = int_to_ptr.vmem [resolvable:$true] %s214
          %220 = dma.hbm_to_vmem [thread:$0]  %s213, 32768, %s215, [#allocation9], 2048, 2048, 128
        $region20: #{tpu_custom_call.1} parent=11 // pred_fallthru
          _
        // Predicated region
        $region21: #{tpu_custom_call.1} parent=11 // pred_check
          %p221 = pneg %p150
        $region22: #{tpu_custom_call.1} parent=11 // pred_check_branch
          %223 = sbr.rel (%p221) target = $region24
        $region23: #{tpu_custom_call.1} parent=11 // pred_region
          %225 = vsyncadd [#allocation9], 0
          %s227 = sshll.u32 %s4, 4
          %s228 = int_to_ptr.hbm [resolvable:$true] %s227
          %s229 = sshll.u32 [#allocation10], 4
          %s230 = int_to_ptr.vmem [resolvable:$true] %s229
          %232 = dma.hbm_to_vmem [thread:$0]  %s228, 256, %s230, [#allocation9]
        $region24: #{tpu_custom_call.1} parent=11 // pred_fallthru
          _
      $region12: #{tpu_custom_call.1} parent=5 // pred_fallthru
        _
      %p233 = scmp.lt.s32.totalorder %s21, 2
      // Predicated region
      $region25: #{tpu_custom_call.1} parent=5 // pred_check
        %p234 = pneg %p233
      $region26: #{tpu_custom_call.1} parent=5 // pred_check_branch
        %236 = sbr.rel (%p234) target = $region28
      $region27: #{tpu_custom_call.1} parent=5 // pred_region
        // Predicated region
        $region29: #{tpu_custom_call.1} parent=27 // pred_check
          %p237 = pneg %p55
        $region30: #{tpu_custom_call.1} parent=27 // pred_check_branch
          %239 = sbr.rel (%p237) target = $region32
        $region31: #{tpu_custom_call.1} parent=27 // pred_region
          %s240 = sand.u32 %s45, 1
          %s241 = scalar_lea.sflag [#allocation3], %s240
          %s242 = sand.u32 %s45, 1
          %s243 = smul.addr %s242, 8
          %s244 = scalar_lea.vmem [#allocation2], %s243
          %246 = vsyncadd %s241, 0
          %s247 = sadd.s32 %s29, %s28
          %s248 = smul.addr %s247, 8
          %s249 = scalar_lea.hbm %s0, %s248
          %s251 = sshll.u32 %s249, 4
          %s252 = int_to_ptr.hbm [resolvable:$true] %s251
          %s253 = sshll.u32 %s244, 4
          %s254 = int_to_ptr.vmem [resolvable:$true] %s253
          %256 = dma.hbm_to_vmem [thread:$0]  %s252, 128, %s254, %s241
        $region32: #{tpu_custom_call.1} parent=27 // pred_fallthru
          _
        // Predicated region
        $region33: #{tpu_custom_call.1} parent=27 // pred_check
          %p257 = pneg %p81
        $region34: #{tpu_custom_call.1} parent=27 // pred_check_branch
          %259 = sbr.rel (%p257) target = $region36
        $region35: #{tpu_custom_call.1} parent=27 // pred_region
          %s260 = sand.u32 %s21, 1
          %s261 = scalar_lea.sflag [#allocation6], %s260
          %s262 = sand.u32 %s71, 1
          %s263 = scalar_lea.vmem [#allocation5], %s262
          %265 = vsyncadd %s261, 0
          %s266 = scalar_lea.hbm %s1, %s28
          %s268 = sshll.u32 %s266, 4
          %s269 = int_to_ptr.hbm [resolvable:$true] %s268
          %s270 = sshll.u32 %s263, 4
          %s271 = int_to_ptr.vmem [resolvable:$true] %s270
          %273 = dma.hbm_to_vmem [thread:$0]  %s269, 16, %s271, %s261
        $region36: #{tpu_custom_call.1} parent=27 // pred_fallthru
          _
      $region28: #{tpu_custom_call.1} parent=5 // pred_fallthru
        _
      %p274 = scmp.le.s32.totalorder 1, %s21
      %p275 = scmp.lt.s32.totalorder %s21, 3
      %p276 = pnand %p274, %p275
      %p277 = pneg %p276
      // Predicated region
      $region37: #{tpu_custom_call.1} parent=5 // pred_check
        _
      $region38: #{tpu_custom_call.1} parent=5 // pred_check_branch
        %279 = sbr.rel (%p276) target = $region40
      $region39: #{tpu_custom_call.1} parent=5 // pred_region
        %s280 = ssub.s32 %s21, 1
        %s281 = sand.u32 %s48, 1
        %s282 = scalar_lea.sflag [#allocation3], %s281
        %s283 = sand.u32 %s48, 1
        %s284 = smul.addr %s283, 8
        %s285 = scalar_lea.vmem [#allocation2], %s284
        // Predicated region
        $region41: #{tpu_custom_call.1} parent=39 // pred_check
          %p286 = pneg %p61
        $region42: #{tpu_custom_call.1} parent=39 // pred_check_branch
          %288 = sbr.rel (%p286) target = $region44
        $region43: #{tpu_custom_call.1} parent=39 // pred_region
          %290 = dma.done %s282, 128
        $region44: #{tpu_custom_call.1} parent=39 // pred_fallthru
          _
        %s291 = sand.u32 %s26, 1
        %s292 = scalar_lea.sflag [#allocation6], %s291
        %s293 = sand.u32 %s74, 1
        %s294 = scalar_lea.vmem [#allocation5], %s293
        // Predicated region
        $region45: #{tpu_custom_call.1} parent=39 // pred_check
          %p295 = pneg %p87
        $region46: #{tpu_custom_call.1} parent=39 // pred_check_branch
          %297 = sbr.rel (%p295) target = $region48
        $region47: #{tpu_custom_call.1} parent=39 // pred_region
          %299 = dma.done %s292, 16
        $region48: #{tpu_custom_call.1} parent=39 // pred_fallthru
          _
        // Predicated region
        $region49: #{tpu_custom_call.1} parent=39 // pred_check
          %p300 = pneg %p108
        $region50: #{tpu_custom_call.1} parent=39 // pred_check_branch
          %302 = sbr.rel (%p300) target = $region52
        $region51: #{tpu_custom_call.1} parent=39 // pred_region
          %304 = dma.done [#allocation6], 1024
        $region52: #{tpu_custom_call.1} parent=39 // pred_fallthru
          _
        // Predicated region
        $region53: #{tpu_custom_call.1} parent=39 // pred_check
          %p305 = pneg %p129
        $region54: #{tpu_custom_call.1} parent=39 // pred_check_branch
          %307 = sbr.rel (%p305) target = $region56
        $region55: #{tpu_custom_call.1} parent=39 // pred_region
          %309 = dma.done [#allocation9], 32768
        $region56: #{tpu_custom_call.1} parent=39 // pred_fallthru
          _
        // Predicated region
        $region57: #{tpu_custom_call.1} parent=39 // pred_check
          %p310 = pneg %p150
        $region58: #{tpu_custom_call.1} parent=39 // pred_check_branch
          %312 = sbr.rel (%p310) target = $region60
        $region59: #{tpu_custom_call.1} parent=39 // pred_region
          %314 = dma.done [#allocation9], 256
        $region60: #{tpu_custom_call.1} parent=39 // pred_fallthru
          _
        %s315 = sand.u32 %s48, 1
        %s316 = scalar_lea.sflag [#allocation3], %s315
        %s317 = sand.u32 %s48, 1
        %s318 = smul.addr %s317, 8
        %s319 = scalar_lea.vmem [#allocation2], %s318
        %p320 = pneg %p61
        %p321 = pneg %p58
        %s322 = sand.u32 %s26, 1
        %s323 = scalar_lea.sflag [#allocation6], %s322
        %s324 = sand.u32 %s74, 1
        %s325 = scalar_lea.vmem [#allocation5], %s324
        %p326 = pneg %p87
        %p327 = pneg %p84
        %p328 = pneg %p108
        %p329 = pneg %p105
        %p330 = pneg %p129
        %p331 = pneg %p126
        %p332 = pneg %p150
        %p333 = pneg %p147
        %p334 = pneg %p178
        %p335 = pneg %p175
        %s336 = sand.u32 %s165, 1
        %s337 = scalar_lea.sflag [#allocation4], %s336
        %s338 = sand.u32 %s165, 1
        %s339 = smul.addr %s338, 128
        %s340 = scalar_lea.vmem [#allocation11], %s339
        %v341 = vld [vmem:[%s285] sm:$0xff]
        %v342 = vld [vmem:[#allocation7] sm:$0xff]
        %v343 = vld [vmem:[#allocation7 + $0x8] sm:$0xff]
        %v344 = vld [vmem:[#allocation7 + $0x10] sm:$0xff]
        %v345 = vld [vmem:[#allocation7 + $0x18] sm:$0xff]
        %v346 = vld [vmem:[#allocation7 + $0x20] sm:$0xff]
        %v347 = vld [vmem:[#allocation7 + $0x28] sm:$0xff]
        %v348 = vld [vmem:[#allocation7 + $0x30] sm:$0xff]
        %v349 = vld [vmem:[#allocation7 + $0x38] sm:$0xff]
        %v350 = vld [vmem:[%s294] sm:$0x1]
        %v352 = vperm.slane %v350, 0
        %vm354 = vcmask 523264
        %v356 = vsel %vm354, %v341, 0
        %358 = vmatpush.msra.mxu0 0.0
        %359 = vmatpush.msra.mxu0 0.0
        %360 = vmatpush.msra.mxu0 0.0
        %361 = vmatpush.msra.mxu0 0.0
        %362 = vmatpush.msra.mxu0 0.0
        %363 = vmatpush.msra.mxu0 0.0
        %364 = vmatpush.msra.mxu0 0.0
        %365 = vmatpush.msra.mxu0 0.0
        %366 = vmatpush.msra.mxu0 %v349
        %367 = vmatpush.msra.mxu0 %v348
        %368 = vmatpush.msra.mxu0 %v347
        %369 = vmatpush.msra.mxu0 %v346
        %370 = vmatpush.msra.mxu0 %v345
        %371 = vmatpush.msra.mxu0 %v344
        %372 = vmatpush.msra.mxu0 %v343
        %373 = vmatpush.msra.mxu0 %v342
        %374 = vmatmul.f32.gmra.mxu0 %v356
        %v375 = vpop.f32.mrf.mxu0
        %v376 = vadd.f32 %v352, %v375
        %377 = vdwg.mxu0
        %v378 = vmax.f32 %v376, 0.0
        %v379 = vld [vmem:[#allocation8] sm:$0xff]
        %v380 = vld [vmem:[#allocation8 + $0x8] sm:$0xff]
        %v381 = vld [vmem:[#allocation8 + $0x10] sm:$0xff]
        %v382 = vld [vmem:[#allocation8 + $0x18] sm:$0xff]
        %v383 = vld [vmem:[#allocation8 + $0x20] sm:$0xff]
        %v384 = vld [vmem:[#allocation8 + $0x28] sm:$0xff]
        %v385 = vld [vmem:[#allocation8 + $0x30] sm:$0xff]
        %v386 = vld [vmem:[#allocation8 + $0x38] sm:$0xff]
        %v387 = vld [vmem:[#allocation8 + $0x40] sm:$0xff]
        %v388 = vld [vmem:[#allocation8 + $0x48] sm:$0xff]
        %v389 = vld [vmem:[#allocation8 + $0x50] sm:$0xff]
        %v390 = vld [vmem:[#allocation8 + $0x58] sm:$0xff]
        %v391 = vld [vmem:[#allocation8 + $0x60] sm:$0xff]
        %v392 = vld [vmem:[#allocation8 + $0x68] sm:$0xff]
        %v393 = vld [vmem:[#allocation8 + $0x70] sm:$0xff]
        %v394 = vld [vmem:[#allocation8 + $0x78] sm:$0xff]
        %v395 = vld [vmem:[#allocation8 + $0x80] sm:$0xff]
        %v396 = vld [vmem:[#allocation8 + $0x88] sm:$0xff]
        %v397 = vld [vmem:[#allocation8 + $0x90] sm:$0xff]
        %v398 = vld [vmem:[#allocation8 + $0x98] sm:$0xff]
        %v399 = vld [vmem:[#allocation8 + $0xa0] sm:$0xff]
        %v400 = vld [vmem:[#allocation8 + $0xa8] sm:$0xff]
        %v401 = vld [vmem:[#allocation8 + $0xb0] sm:$0xff]
        %v402 = vld [vmem:[#allocation8 + $0xb8] sm:$0xff]
        %v403 = vld [vmem:[#allocation8 + $0xc0] sm:$0xff]
        %v404 = vld [vmem:[#allocation8 + $0xc8] sm:$0xff]
        %v405 = vld [vmem:[#allocation8 + $0xd0] sm:$0xff]
        %v406 = vld [vmem:[#allocation8 + $0xd8] sm:$0xff]
        %v407 = vld [vmem:[#allocation8 + $0xe0] sm:$0xff]
        %v408 = vld [vmem:[#allocation8 + $0xe8] sm:$0xff]
        %v409 = vld [vmem:[#allocation8 + $0xf0] sm:$0xff]
        %v410 = vld [vmem:[#allocation8 + $0xf8] sm:$0xff]
        %v411 = vld [vmem:[#allocation8 + $0x100] sm:$0xff]
        %v412 = vld [vmem:[#allocation8 + $0x108] sm:$0xff]
        %v413 = vld [vmem:[#allocation8 + $0x110] sm:$0xff]
        %v414 = vld [vmem:[#allocation8 + $0x118] sm:$0xff]
        %v415 = vld [vmem:[#allocation8 + $0x120] sm:$0xff]
        %v416 = vld [vmem:[#allocation8 + $0x128] sm:$0xff]
        %v417 = vld [vmem:[#allocation8 + $0x130] sm:$0xff]
        %v418 = vld [vmem:[#allocation8 + $0x138] sm:$0xff]
        %v419 = vld [vmem:[#allocation8 + $0x140] sm:$0xff]
        %v420 = vld [vmem:[#allocation8 + $0x148] sm:$0xff]
        %v421 = vld [vmem:[#allocation8 + $0x150] sm:$0xff]
        %v422 = vld [vmem:[#allocation8 + $0x158] sm:$0xff]
        %v423 = vld [vmem:[#allocation8 + $0x160] sm:$0xff]
        %v424 = vld [vmem:[#allocation8 + $0x168] sm:$0xff]
        %v425 = vld [vmem:[#allocation8 + $0x170] sm:$0xff]
        %v426 = vld [vmem:[#allocation8 + $0x178] sm:$0xff]
        %v427 = vld [vmem:[#allocation8 + $0x180] sm:$0xff]
        %v428 = vld [vmem:[#allocation8 + $0x188] sm:$0xff]
        %v429 = vld [vmem:[#allocation8 + $0x190] sm:$0xff]
        %v430 = vld [vmem:[#allocation8 + $0x198] sm:$0xff]
        %v431 = vld [vmem:[#allocation8 + $0x1a0] sm:$0xff]
        %v432 = vld [vmem:[#allocation8 + $0x1a8] sm:$0xff]
        %v433 = vld [vmem:[#allocation8 + $0x1b0] sm:$0xff]
        %v434 = vld [vmem:[#allocation8 + $0x1b8] sm:$0xff]
        %v435 = vld [vmem:[#allocation8 + $0x1c0] sm:$0xff]
        %v436 = vld [vmem:[#allocation8 + $0x1c8] sm:$0xff]
        %v437 = vld [vmem:[#allocation8 + $0x1d0] sm:$0xff]
        %v438 = vld [vmem:[#allocation8 + $0x1d8] sm:$0xff]
        %v439 = vld [vmem:[#allocation8 + $0x1e0] sm:$0xff]
        %v440 = vld [vmem:[#allocation8 + $0x1e8] sm:$0xff]
        %v441 = vld [vmem:[#allocation8 + $0x1f0] sm:$0xff]
        %v442 = vld [vmem:[#allocation8 + $0x1f8] sm:$0xff]
        %v443 = vld [vmem:[#allocation8 + $0x200] sm:$0xff]
        %v444 = vld [vmem:[#allocation8 + $0x208] sm:$0xff]
        %v445 = vld [vmem:[#allocation8 + $0x210] sm:$0xff]
        %v446 = vld [vmem:[#allocation8 + $0x218] sm:$0xff]
        %v447 = vld [vmem:[#allocation8 + $0x220] sm:$0xff]
        %v448 = vld [vmem:[#allocation8 + $0x228] sm:$0xff]
        %v449 = vld [vmem:[#allocation8 + $0x230] sm:$0xff]
        %v450 = vld [vmem:[#allocation8 + $0x238] sm:$0xff]
        %v451 = vld [vmem:[#allocation8 + $0x240] sm:$0xff]
        %v452 = vld [vmem:[#allocation8 + $0x248] sm:$0xff]
        %v453 = vld [vmem:[#allocation8 + $0x250] sm:$0xff]
        %v454 = vld [vmem:[#allocation8 + $0x258] sm:$0xff]
        %v455 = vld [vmem:[#allocation8 + $0x260] sm:$0xff]
        %v456 = vld [vmem:[#allocation8 + $0x268] sm:$0xff]
        %v457 = vld [vmem:[#allocation8 + $0x270] sm:$0xff]
        %v458 = vld [vmem:[#allocation8 + $0x278] sm:$0xff]
        %v459 = vld [vmem:[#allocation8 + $0x280] sm:$0xff]
        %v460 = vld [vmem:[#allocation8 + $0x288] sm:$0xff]
        %v461 = vld [vmem:[#allocation8 + $0x290] sm:$0xff]
        %v462 = vld [vmem:[#allocation8 + $0x298] sm:$0xff]
        %v463 = vld [vmem:[#allocation8 + $0x2a0] sm:$0xff]
        %v464 = vld [vmem:[#allocation8 + $0x2a8] sm:$0xff]
        %v465 = vld [vmem:[#allocation8 + $0x2b0] sm:$0xff]
        %v466 = vld [vmem:[#allocation8 + $0x2b8] sm:$0xff]
        %v467 = vld [vmem:[#allocation8 + $0x2c0] sm:$0xff]
        %v468 = vld [vmem:[#allocation8 + $0x2c8] sm:$0xff]
        %v469 = vld [vmem:[#allocation8 + $0x2d0] sm:$0xff]
        %v470 = vld [vmem:[#allocation8 + $0x2d8] sm:$0xff]
        %v471 = vld [vmem:[#allocation8 + $0x2e0] sm:$0xff]
        %v472 = vld [vmem:[#allocation8 + $0x2e8] sm:$0xff]
        %v473 = vld [vmem:[#allocation8 + $0x2f0] sm:$0xff]
        %v474 = vld [vmem:[#allocation8 + $0x2f8] sm:$0xff]
        %v475 = vld [vmem:[#allocation8 + $0x300] sm:$0xff]
        %v476 = vld [vmem:[#allocation8 + $0x308] sm:$0xff]
        %v477 = vld [vmem:[#allocation8 + $0x310] sm:$0xff]
        %v478 = vld [vmem:[#allocation8 + $0x318] sm:$0xff]
        %v479 = vld [vmem:[#allocation8 + $0x320] sm:$0xff]
        %v480 = vld [vmem:[#allocation8 + $0x328] sm:$0xff]
        %v481 = vld [vmem:[#allocation8 + $0x330] sm:$0xff]
        %v482 = vld [vmem:[#allocation8 + $0x338] sm:$0xff]
        %v483 = vld [vmem:[#allocation8 + $0x340] sm:$0xff]
        %v484 = vld [vmem:[#allocation8 + $0x348] sm:$0xff]
        %v485 = vld [vmem:[#allocation8 + $0x350] sm:$0xff]
        %v486 = vld [vmem:[#allocation8 + $0x358] sm:$0xff]
        %v487 = vld [vmem:[#allocation8 + $0x360] sm:$0xff]
        %v488 = vld [vmem:[#allocation8 + $0x368] sm:$0xff]
        %v489 = vld [vmem:[#allocation8 + $0x370] sm:$0xff]
        %v490 = vld [vmem:[#allocation8 + $0x378] sm:$0xff]
        %v491 = vld [vmem:[#allocation8 + $0x380] sm:$0xff]
        %v492 = vld [vmem:[#allocation8 + $0x388] sm:$0xff]
        %v493 = vld [vmem:[#allocation8 + $0x390] sm:$0xff]
        %v494 = vld [vmem:[#allocation8 + $0x398] sm:$0xff]
        %v495 = vld [vmem:[#allocation8 + $0x3a0] sm:$0xff]
        %v496 = vld [vmem:[#allocation8 + $0x3a8] sm:$0xff]
        %v497 = vld [vmem:[#allocation8 + $0x3b0] sm:$0xff]
        %v498 = vld [vmem:[#allocation8 + $0x3b8] sm:$0xff]
        %v499 = vld [vmem:[#allocation8 + $0x3c0] sm:$0xff]
        %v500 = vld [vmem:[#allocation8 + $0x3c8] sm:$0xff]
        %v501 = vld [vmem:[#allocation8 + $0x3d0] sm:$0xff]
        %v502 = vld [vmem:[#allocation8 + $0x3d8] sm:$0xff]
        %v503 = vld [vmem:[#allocation8 + $0x3e0] sm:$0xff]
        %v504 = vld [vmem:[#allocation8 + $0x3e8] sm:$0xff]
        %v505 = vld [vmem:[#allocation8 + $0x3f0] sm:$0xff]
        %v506 = vld [vmem:[#allocation8 + $0x3f8] sm:$0xff]
        %v507 = vld [vmem:[#allocation8 + $0x400] sm:$0xff]
        %v508 = vld [vmem:[#allocation8 + $0x408] sm:$0xff]
        %v509 = vld [vmem:[#allocation8 + $0x410] sm:$0xff]
        %v510 = vld [vmem:[#allocation8 + $0x418] sm:$0xff]
        %v511 = vld [vmem:[#allocation8 + $0x420] sm:$0xff]
        %v512 = vld [vmem:[#allocation8 + $0x428] sm:$0xff]
        %v513 = vld [vmem:[#allocation8 + $0x430] sm:$0xff]
        %v514 = vld [vmem:[#allocation8 + $0x438] sm:$0xff]
        %v515 = vld [vmem:[#allocation8 + $0x440] sm:$0xff]
        %v516 = vld [vmem:[#allocation8 + $0x448] sm:$0xff]
        %v517 = vld [vmem:[#allocation8 + $0x450] sm:$0xff]
        %v518 = vld [vmem:[#allocation8 + $0x458] sm:$0xff]
        %v519 = vld [vmem:[#allocation8 + $0x460] sm:$0xff]
        %v520 = vld [vmem:[#allocation8 + $0x468] sm:$0xff]
        %v521 = vld [vmem:[#allocation8 + $0x470] sm:$0xff]
        %v522 = vld [vmem:[#allocation8 + $0x478] sm:$0xff]
        %v523 = vld [vmem:[#allocation8 + $0x480] sm:$0xff]
        %v524 = vld [vmem:[#allocation8 + $0x488] sm:$0xff]
        %v525 = vld [vmem:[#allocation8 + $0x490] sm:$0xff]
        %v526 = vld [vmem:[#allocation8 + $0x498] sm:$0xff]
        %v527 = vld [vmem:[#allocation8 + $0x4a0] sm:$0xff]
        %v528 = vld [vmem:[#allocation8 + $0x4a8] sm:$0xff]
        %v529 = vld [vmem:[#allocation8 + $0x4b0] sm:$0xff]
        %v530 = vld [vmem:[#allocation8 + $0x4b8] sm:$0xff]
        %v531 = vld [vmem:[#allocation8 + $0x4c0] sm:$0xff]
        %v532 = vld [vmem:[#allocation8 + $0x4c8] sm:$0xff]
        %v533 = vld [vmem:[#allocation8 + $0x4d0] sm:$0xff]
        %v534 = vld [vmem:[#allocation8 + $0x4d8] sm:$0xff]
        %v535 = vld [vmem:[#allocation8 + $0x4e0] sm:$0xff]
        %v536 = vld [vmem:[#allocation8 + $0x4e8] sm:$0xff]
        %v537 = vld [vmem:[#allocation8 + $0x4f0] sm:$0xff]
        %v538 = vld [vmem:[#allocation8 + $0x4f8] sm:$0xff]
        %v539 = vld [vmem:[#allocation8 + $0x500] sm:$0xff]
        %v540 = vld [vmem:[#allocation8 + $0x508] sm:$0xff]
        %v541 = vld [vmem:[#allocation8 + $0x510] sm:$0xff]
        %v542 = vld [vmem:[#allocation8 + $0x518] sm:$0xff]
        %v543 = vld [vmem:[#allocation8 + $0x520] sm:$0xff]
        %v544 = vld [vmem:[#allocation8 + $0x528] sm:$0xff]
        %v545 = vld [vmem:[#allocation8 + $0x530] sm:$0xff]
        %v546 = vld [vmem:[#allocation8 + $0x538] sm:$0xff]
        %v547 = vld [vmem:[#allocation8 + $0x540] sm:$0xff]
        %v548 = vld [vmem:[#allocation8 + $0x548] sm:$0xff]
        %v549 = vld [vmem:[#allocation8 + $0x550] sm:$0xff]
        %v550 = vld [vmem:[#allocation8 + $0x558] sm:$0xff]
        %v551 = vld [vmem:[#allocation8 + $0x560] sm:$0xff]
        %v552 = vld [vmem:[#allocation8 + $0x568] sm:$0xff]
        %v553 = vld [vmem:[#allocation8 + $0x570] sm:$0xff]
        %v554 = vld [vmem:[#allocation8 + $0x578] sm:$0xff]
        %v555 = vld [vmem:[#allocation8 + $0x580] sm:$0xff]
        %v556 = vld [vmem:[#allocation8 + $0x588] sm:$0xff]
        %v557 = vld [vmem:[#allocation8 + $0x590] sm:$0xff]
        %v558 = vld [vmem:[#allocation8 + $0x598] sm:$0xff]
        %v559 = vld [vmem:[#allocation8 + $0x5a0] sm:$0xff]
        %v560 = vld [vmem:[#allocation8 + $0x5a8] sm:$0xff]
        %v561 = vld [vmem:[#allocation8 + $0x5b0] sm:$0xff]
        %v562 = vld [vmem:[#allocation8 + $0x5b8] sm:$0xff]
        %v563 = vld [vmem:[#allocation8 + $0x5c0] sm:$0xff]
        %v564 = vld [vmem:[#allocation8 + $0x5c8] sm:$0xff]
        %v565 = vld [vmem:[#allocation8 + $0x5d0] sm:$0xff]
        %v566 = vld [vmem:[#allocation8 + $0x5d8] sm:$0xff]
        %v567 = vld [vmem:[#allocation8 + $0x5e0] sm:$0xff]
        %v568 = vld [vmem:[#allocation8 + $0x5e8] sm:$0xff]
        %v569 = vld [vmem:[#allocation8 + $0x5f0] sm:$0xff]
        %v570 = vld [vmem:[#allocation8 + $0x5f8] sm:$0xff]
        %v571 = vld [vmem:[#allocation8 + $0x600] sm:$0xff]
        %v572 = vld [vmem:[#allocation8 + $0x608] sm:$0xff]
        %v573 = vld [vmem:[#allocation8 + $0x610] sm:$0xff]
        %v574 = vld [vmem:[#allocation8 + $0x618] sm:$0xff]
        %v575 = vld [vmem:[#allocation8 + $0x620] sm:$0xff]
        %v576 = vld [vmem:[#allocation8 + $0x628] sm:$0xff]
        %v577 = vld [vmem:[#allocation8 + $0x630] sm:$0xff]
        %v578 = vld [vmem:[#allocation8 + $0x638] sm:$0xff]
        %v579 = vld [vmem:[#allocation8 + $0x640] sm:$0xff]
        %v580 = vld [vmem:[#allocation8 + $0x648] sm:$0xff]
        %v581 = vld [vmem:[#allocation8 + $0x650] sm:$0xff]
        %v582 = vld [vmem:[#allocation8 + $0x658] sm:$0xff]
        %v583 = vld [vmem:[#allocation8 + $0x660] sm:$0xff]
        %v584 = vld [vmem:[#allocation8 + $0x668] sm:$0xff]
        %v585 = vld [vmem:[#allocation8 + $0x670] sm:$0xff]
        %v586 = vld [vmem:[#allocation8 + $0x678] sm:$0xff]
        %v587 = vld [vmem:[#allocation8 + $0x680] sm:$0xff]
        %v588 = vld [vmem:[#allocation8 + $0x688] sm:$0xff]
        %v589 = vld [vmem:[#allocation8 + $0x690] sm:$0xff]
        %v590 = vld [vmem:[#allocation8 + $0x698] sm:$0xff]
        %v591 = vld [vmem:[#allocation8 + $0x6a0] sm:$0xff]
        %v592 = vld [vmem:[#allocation8 + $0x6a8] sm:$0xff]
        %v593 = vld [vmem:[#allocation8 + $0x6b0] sm:$0xff]
        %v594 = vld [vmem:[#allocation8 + $0x6b8] sm:$0xff]
        %v595 = vld [vmem:[#allocation8 + $0x6c0] sm:$0xff]
        %v596 = vld [vmem:[#allocation8 + $0x6c8] sm:$0xff]
        %v597 = vld [vmem:[#allocation8 + $0x6d0] sm:$0xff]
        %v598 = vld [vmem:[#allocation8 + $0x6d8] sm:$0xff]
        %v599 = vld [vmem:[#allocation8 + $0x6e0] sm:$0xff]
        %v600 = vld [vmem:[#allocation8 + $0x6e8] sm:$0xff]
        %v601 = vld [vmem:[#allocation8 + $0x6f0] sm:$0xff]
        %v602 = vld [vmem:[#allocation8 + $0x6f8] sm:$0xff]
        %v603 = vld [vmem:[#allocation8 + $0x700] sm:$0xff]
        %v604 = vld [vmem:[#allocation8 + $0x708] sm:$0xff]
        %v605 = vld [vmem:[#allocation8 + $0x710] sm:$0xff]
        %v606 = vld [vmem:[#allocation8 + $0x718] sm:$0xff]
        %v607 = vld [vmem:[#allocation8 + $0x720] sm:$0xff]
        %v608 = vld [vmem:[#allocation8 + $0x728] sm:$0xff]
        %v609 = vld [vmem:[#allocation8 + $0x730] sm:$0xff]
        %v610 = vld [vmem:[#allocation8 + $0x738] sm:$0xff]
        %v611 = vld [vmem:[#allocation8 + $0x740] sm:$0xff]
        %v612 = vld [vmem:[#allocation8 + $0x748] sm:$0xff]
        %v613 = vld [vmem:[#allocation8 + $0x750] sm:$0xff]
        %v614 = vld [vmem:[#allocation8 + $0x758] sm:$0xff]
        %v615 = vld [vmem:[#allocation8 + $0x760] sm:$0xff]
        %v616 = vld [vmem:[#allocation8 + $0x768] sm:$0xff]
        %v617 = vld [vmem:[#allocation8 + $0x770] sm:$0xff]
        %v618 = vld [vmem:[#allocation8 + $0x778] sm:$0xff]
        %v619 = vld [vmem:[#allocation8 + $0x780] sm:$0xff]
        %v620 = vld [vmem:[#allocation8 + $0x788] sm:$0xff]
        %v621 = vld [vmem:[#allocation8 + $0x790] sm:$0xff]
        %v622 = vld [vmem:[#allocation8 + $0x798] sm:$0xff]
        %v623 = vld [vmem:[#allocation8 + $0x7a0] sm:$0xff]
        %v624 = vld [vmem:[#allocation8 + $0x7a8] sm:$0xff]
        %v625 = vld [vmem:[#allocation8 + $0x7b0] sm:$0xff]
        %v626 = vld [vmem:[#allocation8 + $0x7b8] sm:$0xff]
        %v627 = vld [vmem:[#allocation8 + $0x7c0] sm:$0xff]
        %v628 = vld [vmem:[#allocation8 + $0x7c8] sm:$0xff]
        %v629 = vld [vmem:[#allocation8 + $0x7d0] sm:$0xff]
        %v630 = vld [vmem:[#allocation8 + $0x7d8] sm:$0xff]
        %v631 = vld [vmem:[#allocation8 + $0x7e0] sm:$0xff]
        %v632 = vld [vmem:[#allocation8 + $0x7e8] sm:$0xff]
        %v633 = vld [vmem:[#allocation8 + $0x7f0] sm:$0xff]
        %v634 = vld [vmem:[#allocation8 + $0x7f8] sm:$0xff]
        %v635 = vld [vmem:[#allocation10] sm:$0xff]
        %v636 = vld [vmem:[#allocation10 + $0x8] sm:$0xff]
        %v639 = vperm.slane %v635, 0
        %v640 = vperm.slane %v635, 1
        %v641 = vperm.slane %v635, 2
        %v642 = vperm.slane %v635, 3
        %v643 = vperm.slane %v635, 4
        %v644 = vperm.slane %v635, 5
        %v645 = vperm.slane %v635, 6
        %v646 = vperm.slane %v635, 7
        %v647 = vperm.slane %v636, 0
        %v648 = vperm.slane %v636, 1
        %v649 = vperm.slane %v636, 2
        %v650 = vperm.slane %v636, 3
        %v651 = vperm.slane %v636, 4
        %v652 = vperm.slane %v636, 5
        %v653 = vperm.slane %v636, 6
        %v654 = vperm.slane %v636, 7
        %671 = vmatpush.msra.mxu0 %v619
        %672 = vmatpush.msra.mxu0 %v603
        %673 = vmatpush.msra.mxu0 %v587
        %674 = vmatpush.msra.mxu0 %v571
        %675 = vmatpush.msra.mxu0 %v555
        %676 = vmatpush.msra.mxu0 %v539
        %677 = vmatpush.msra.mxu0 %v523
        %678 = vmatpush.msra.mxu0 %v507
        %679 = vmatpush.msra.mxu0 %v491
        %680 = vmatpush.msra.mxu0 %v475
        %681 = vmatpush.msra.mxu0 %v459
        %682 = vmatpush.msra.mxu0 %v443
        %683 = vmatpush.msra.mxu0 %v427
        %684 = vmatpush.msra.mxu0 %v411
        %685 = vmatpush.msra.mxu0 %v395
        %686 = vmatpush.msra.mxu0 %v379
        %687 = vmatmul.f32.gmra.mxu0 %v378
        %v688 = vpop.f32.mrf.mxu0
        %v689 = vadd.f32 %v639, %v688
        %690 = vdwg.mxu0
        %691 = vmatpush.msra.mxu0 %v620
        %692 = vmatpush.msra.mxu0 %v604
        %693 = vmatpush.msra.mxu0 %v588
        %694 = vmatpush.msra.mxu0 %v572
        %695 = vmatpush.msra.mxu0 %v556
        %696 = vmatpush.msra.mxu0 %v540
        %697 = vmatpush.msra.mxu0 %v524
        %698 = vmatpush.msra.mxu0 %v508
        %699 = vmatpush.msra.mxu0 %v492
        %700 = vmatpush.msra.mxu0 %v476
        %701 = vmatpush.msra.mxu0 %v460
        %702 = vmatpush.msra.mxu0 %v444
        %703 = vmatpush.msra.mxu0 %v428
        %704 = vmatpush.msra.mxu0 %v412
        %705 = vmatpush.msra.mxu0 %v396
        %706 = vmatpush.msra.mxu0 %v380
        %707 = vmatmul.f32.gmra.mxu0 %v378
        %v708 = vpop.f32.mrf.mxu0
        %v709 = vadd.f32 %v640, %v708
        %710 = vdwg.mxu0
        %711 = vmatpush.msra.mxu0 %v621
        %712 = vmatpush.msra.mxu0 %v605
        %713 = vmatpush.msra.mxu0 %v589
        %714 = vmatpush.msra.mxu0 %v573
        %715 = vmatpush.msra.mxu0 %v557
        %716 = vmatpush.msra.mxu0 %v541
        %717 = vmatpush.msra.mxu0 %v525
        %718 = vmatpush.msra.mxu0 %v509
        %719 = vmatpush.msra.mxu0 %v493
        %720 = vmatpush.msra.mxu0 %v477
        %721 = vmatpush.msra.mxu0 %v461
        %722 = vmatpush.msra.mxu0 %v445
        %723 = vmatpush.msra.mxu0 %v429
        %724 = vmatpush.msra.mxu0 %v413
        %725 = vmatpush.msra.mxu0 %v397
        %726 = vmatpush.msra.mxu0 %v381
        %727 = vmatmul.f32.gmra.mxu0 %v378
        %v728 = vpop.f32.mrf.mxu0
        %v729 = vadd.f32 %v641, %v728
        %730 = vdwg.mxu0
        %731 = vmatpush.msra.mxu0 %v622
        %732 = vmatpush.msra.mxu0 %v606
        %733 = vmatpush.msra.mxu0 %v590
        %734 = vmatpush.msra.mxu0 %v574
        %735 = vmatpush.msra.mxu0 %v558
        %736 = vmatpush.msra.mxu0 %v542
        %737 = vmatpush.msra.mxu0 %v526
        %738 = vmatpush.msra.mxu0 %v510
        %739 = vmatpush.msra.mxu0 %v494
        %740 = vmatpush.msra.mxu0 %v478
        %741 = vmatpush.msra.mxu0 %v462
        %742 = vmatpush.msra.mxu0 %v446
        %743 = vmatpush.msra.mxu0 %v430
        %744 = vmatpush.msra.mxu0 %v414
        %745 = vmatpush.msra.mxu0 %v398
        %746 = vmatpush.msra.mxu0 %v382
        %747 = vmatmul.f32.gmra.mxu0 %v378
        %v748 = vpop.f32.mrf.mxu0
        %v749 = vadd.f32 %v642, %v748
        %750 = vdwg.mxu0
        %751 = vmatpush.msra.mxu0 %v623
        %752 = vmatpush.msra.mxu0 %v607
        %753 = vmatpush.msra.mxu0 %v591
        %754 = vmatpush.msra.mxu0 %v575
        %755 = vmatpush.msra.mxu0 %v559
        %756 = vmatpush.msra.mxu0 %v543
        %757 = vmatpush.msra.mxu0 %v527
        %758 = vmatpush.msra.mxu0 %v511
        %759 = vmatpush.msra.mxu0 %v495
        %760 = vmatpush.msra.mxu0 %v479
        %761 = vmatpush.msra.mxu0 %v463
        %762 = vmatpush.msra.mxu0 %v447
        %763 = vmatpush.msra.mxu0 %v431
        %764 = vmatpush.msra.mxu0 %v415
        %765 = vmatpush.msra.mxu0 %v399
        %766 = vmatpush.msra.mxu0 %v383
        %767 = vmatmul.f32.gmra.mxu0 %v378
        %v768 = vpop.f32.mrf.mxu0
        %v769 = vadd.f32 %v643, %v768
        %770 = vdwg.mxu0
        %771 = vmatpush.msra.mxu0 %v624
        %772 = vmatpush.msra.mxu0 %v608
        %773 = vmatpush.msra.mxu0 %v592
        %774 = vmatpush.msra.mxu0 %v576
        %775 = vmatpush.msra.mxu0 %v560
        %776 = vmatpush.msra.mxu0 %v544
        %777 = vmatpush.msra.mxu0 %v528
        %778 = vmatpush.msra.mxu0 %v512
        %779 = vmatpush.msra.mxu0 %v496
        %780 = vmatpush.msra.mxu0 %v480
        %781 = vmatpush.msra.mxu0 %v464
        %782 = vmatpush.msra.mxu0 %v448
        %783 = vmatpush.msra.mxu0 %v432
        %784 = vmatpush.msra.mxu0 %v416
        %785 = vmatpush.msra.mxu0 %v400
        %786 = vmatpush.msra.mxu0 %v384
        %787 = vmatmul.f32.gmra.mxu0 %v378
        %v788 = vpop.f32.mrf.mxu0
        %v789 = vadd.f32 %v644, %v788
        %790 = vdwg.mxu0
        %791 = vmatpush.msra.mxu0 %v625
        %792 = vmatpush.msra.mxu0 %v609
        %793 = vmatpush.msra.mxu0 %v593
        %794 = vmatpush.msra.mxu0 %v577
        %795 = vmatpush.msra.mxu0 %v561
        %796 = vmatpush.msra.mxu0 %v545
        %797 = vmatpush.msra.mxu0 %v529
        %798 = vmatpush.msra.mxu0 %v513
        %799 = vmatpush.msra.mxu0 %v497
        %800 = vmatpush.msra.mxu0 %v481
        %801 = vmatpush.msra.mxu0 %v465
        %802 = vmatpush.msra.mxu0 %v449
        %803 = vmatpush.msra.mxu0 %v433
        %804 = vmatpush.msra.mxu0 %v417
        %805 = vmatpush.msra.mxu0 %v401
        %806 = vmatpush.msra.mxu0 %v385
        %807 = vmatmul.f32.gmra.mxu0 %v378
        %v808 = vpop.f32.mrf.mxu0
        %v809 = vadd.f32 %v645, %v808
        %810 = vdwg.mxu0
        %811 = vmatpush.msra.mxu0 %v626
        %812 = vmatpush.msra.mxu0 %v610
        %813 = vmatpush.msra.mxu0 %v594
        %814 = vmatpush.msra.mxu0 %v578
        %815 = vmatpush.msra.mxu0 %v562
        %816 = vmatpush.msra.mxu0 %v546
        %817 = vmatpush.msra.mxu0 %v530
        %818 = vmatpush.msra.mxu0 %v514
        %819 = vmatpush.msra.mxu0 %v498
        %820 = vmatpush.msra.mxu0 %v482
        %821 = vmatpush.msra.mxu0 %v466
        %822 = vmatpush.msra.mxu0 %v450
        %823 = vmatpush.msra.mxu0 %v434
        %824 = vmatpush.msra.mxu0 %v418
        %825 = vmatpush.msra.mxu0 %v402
        %826 = vmatpush.msra.mxu0 %v386
        %827 = vmatmul.f32.gmra.mxu0 %v378
        %v828 = vpop.f32.mrf.mxu0
        %v829 = vadd.f32 %v646, %v828
        %830 = vdwg.mxu0
        %831 = vmatpush.msra.mxu0 %v627
        %832 = vmatpush.msra.mxu0 %v611
        %833 = vmatpush.msra.mxu0 %v595
        %834 = vmatpush.msra.mxu0 %v579
        %835 = vmatpush.msra.mxu0 %v563
        %836 = vmatpush.msra.mxu0 %v547
        %837 = vmatpush.msra.mxu0 %v531
        %838 = vmatpush.msra.mxu0 %v515
        %839 = vmatpush.msra.mxu0 %v499
        %840 = vmatpush.msra.mxu0 %v483
        %841 = vmatpush.msra.mxu0 %v467
        %842 = vmatpush.msra.mxu0 %v451
        %843 = vmatpush.msra.mxu0 %v435
        %844 = vmatpush.msra.mxu0 %v419
        %845 = vmatpush.msra.mxu0 %v403
        %846 = vmatpush.msra.mxu0 %v387
        %847 = vmatmul.f32.gmra.mxu0 %v378
        %v848 = vpop.f32.mrf.mxu0
        %v849 = vadd.f32 %v647, %v848
        %850 = vdwg.mxu0
        %851 = vmatpush.msra.mxu0 %v628
        %852 = vmatpush.msra.mxu0 %v612
        %853 = vmatpush.msra.mxu0 %v596
        %854 = vmatpush.msra.mxu0 %v580
        %855 = vmatpush.msra.mxu0 %v564
        %856 = vmatpush.msra.mxu0 %v548
        %857 = vmatpush.msra.mxu0 %v532
        %858 = vmatpush.msra.mxu0 %v516
        %859 = vmatpush.msra.mxu0 %v500
        %860 = vmatpush.msra.mxu0 %v484
        %861 = vmatpush.msra.mxu0 %v468
        %862 = vmatpush.msra.mxu0 %v452
        %863 = vmatpush.msra.mxu0 %v436
        %864 = vmatpush.msra.mxu0 %v420
        %865 = vmatpush.msra.mxu0 %v404
        %866 = vmatpush.msra.mxu0 %v388
        %867 = vmatmul.f32.gmra.mxu0 %v378
        %v868 = vpop.f32.mrf.mxu0
        %v869 = vadd.f32 %v648, %v868
        %870 = vdwg.mxu0
        %871 = vmatpush.msra.mxu0 %v629
        %872 = vmatpush.msra.mxu0 %v613
        %873 = vmatpush.msra.mxu0 %v597
        %874 = vmatpush.msra.mxu0 %v581
        %875 = vmatpush.msra.mxu0 %v565
        %876 = vmatpush.msra.mxu0 %v549
        %877 = vmatpush.msra.mxu0 %v533
        %878 = vmatpush.msra.mxu0 %v517
        %879 = vmatpush.msra.mxu0 %v501
        %880 = vmatpush.msra.mxu0 %v485
        %881 = vmatpush.msra.mxu0 %v469
        %882 = vmatpush.msra.mxu0 %v453
        %883 = vmatpush.msra.mxu0 %v437
        %884 = vmatpush.msra.mxu0 %v421
        %885 = vmatpush.msra.mxu0 %v405
        %886 = vmatpush.msra.mxu0 %v389
        %887 = vmatmul.f32.gmra.mxu0 %v378
        %v888 = vpop.f32.mrf.mxu0
        %v889 = vadd.f32 %v649, %v888
        %890 = vdwg.mxu0
        %891 = vmatpush.msra.mxu0 %v630
        %892 = vmatpush.msra.mxu0 %v614
        %893 = vmatpush.msra.mxu0 %v598
        %894 = vmatpush.msra.mxu0 %v582
        %895 = vmatpush.msra.mxu0 %v566
        %896 = vmatpush.msra.mxu0 %v550
        %897 = vmatpush.msra.mxu0 %v534
        %898 = vmatpush.msra.mxu0 %v518
        %899 = vmatpush.msra.mxu0 %v502
        %900 = vmatpush.msra.mxu0 %v486
        %901 = vmatpush.msra.mxu0 %v470
        %902 = vmatpush.msra.mxu0 %v454
        %903 = vmatpush.msra.mxu0 %v438
        %904 = vmatpush.msra.mxu0 %v422
        %905 = vmatpush.msra.mxu0 %v406
        %906 = vmatpush.msra.mxu0 %v390
        %907 = vmatmul.f32.gmra.mxu0 %v378
        %v908 = vpop.f32.mrf.mxu0
        %v909 = vadd.f32 %v650, %v908
        %910 = vdwg.mxu0
        %911 = vmatpush.msra.mxu0 %v631
        %912 = vmatpush.msra.mxu0 %v615
        %913 = vmatpush.msra.mxu0 %v599
        %914 = vmatpush.msra.mxu0 %v583
        %915 = vmatpush.msra.mxu0 %v567
        %916 = vmatpush.msra.mxu0 %v551
        %917 = vmatpush.msra.mxu0 %v535
        %918 = vmatpush.msra.mxu0 %v519
        %919 = vmatpush.msra.mxu0 %v503
        %920 = vmatpush.msra.mxu0 %v487
        %921 = vmatpush.msra.mxu0 %v471
        %922 = vmatpush.msra.mxu0 %v455
        %923 = vmatpush.msra.mxu0 %v439
        %924 = vmatpush.msra.mxu0 %v423
        %925 = vmatpush.msra.mxu0 %v407
        %926 = vmatpush.msra.mxu0 %v391
        %927 = vmatmul.f32.gmra.mxu0 %v378
        %v928 = vpop.f32.mrf.mxu0
        %v929 = vadd.f32 %v651, %v928
        %930 = vdwg.mxu0
        %931 = vmatpush.msra.mxu0 %v632
        %932 = vmatpush.msra.mxu0 %v616
        %933 = vmatpush.msra.mxu0 %v600
        %934 = vmatpush.msra.mxu0 %v584
        %935 = vmatpush.msra.mxu0 %v568
        %936 = vmatpush.msra.mxu0 %v552
        %937 = vmatpush.msra.mxu0 %v536
        %938 = vmatpush.msra.mxu0 %v520
        %939 = vmatpush.msra.mxu0 %v504
        %940 = vmatpush.msra.mxu0 %v488
        %941 = vmatpush.msra.mxu0 %v472
        %942 = vmatpush.msra.mxu0 %v456
        %943 = vmatpush.msra.mxu0 %v440
        %944 = vmatpush.msra.mxu0 %v424
        %945 = vmatpush.msra.mxu0 %v408
        %946 = vmatpush.msra.mxu0 %v392
        %947 = vmatmul.f32.gmra.mxu0 %v378
        %v948 = vpop.f32.mrf.mxu0
        %v949 = vadd.f32 %v652, %v948
        %950 = vdwg.mxu0
        %951 = vmatpush.msra.mxu0 %v633
        %952 = vmatpush.msra.mxu0 %v617
        %953 = vmatpush.msra.mxu0 %v601
        %954 = vmatpush.msra.mxu0 %v585
        %955 = vmatpush.msra.mxu0 %v569
        %956 = vmatpush.msra.mxu0 %v553
        %957 = vmatpush.msra.mxu0 %v537
        %958 = vmatpush.msra.mxu0 %v521
        %959 = vmatpush.msra.mxu0 %v505
        %960 = vmatpush.msra.mxu0 %v489
        %961 = vmatpush.msra.mxu0 %v473
        %962 = vmatpush.msra.mxu0 %v457
        %963 = vmatpush.msra.mxu0 %v441
        %964 = vmatpush.msra.mxu0 %v425
        %965 = vmatpush.msra.mxu0 %v409
        %966 = vmatpush.msra.mxu0 %v393
        %967 = vmatmul.f32.gmra.mxu0 %v378
        %v968 = vpop.f32.mrf.mxu0
        %v969 = vadd.f32 %v653, %v968
        %970 = vdwg.mxu0
        %971 = vmatpush.msra.mxu0 %v634
        %972 = vmatpush.msra.mxu0 %v618
        %973 = vmatpush.msra.mxu0 %v602
        %974 = vmatpush.msra.mxu0 %v586
        %975 = vmatpush.msra.mxu0 %v570
        %976 = vmatpush.msra.mxu0 %v554
        %977 = vmatpush.msra.mxu0 %v538
        %978 = vmatpush.msra.mxu0 %v522
        %979 = vmatpush.msra.mxu0 %v506
        %980 = vmatpush.msra.mxu0 %v490
        %981 = vmatpush.msra.mxu0 %v474
        %982 = vmatpush.msra.mxu0 %v458
        %983 = vmatpush.msra.mxu0 %v442
        %984 = vmatpush.msra.mxu0 %v426
        %985 = vmatpush.msra.mxu0 %v410
        %986 = vmatpush.msra.mxu0 %v394
        %987 = vmatmul.f32.gmra.mxu0 %v378
        %v988 = vpop.f32.mrf.mxu0
        %v989 = vadd.f32 %v654, %v988
        %990 = vdwg.mxu0
        %991 = vst [vmem:[%s340] sm:$0xff] %v689
        %992 = vst [vmem:[%s340 + $0x8] sm:$0xff] %v709
        %993 = vst [vmem:[%s340 + $0x10] sm:$0xff] %v729
        %994 = vst [vmem:[%s340 + $0x18] sm:$0xff] %v749
        %995 = vst [vmem:[%s340 + $0x20] sm:$0xff] %v769
        %996 = vst [vmem:[%s340 + $0x28] sm:$0xff] %v789
        %997 = vst [vmem:[%s340 + $0x30] sm:$0xff] %v809
        %998 = vst [vmem:[%s340 + $0x38] sm:$0xff] %v829
        %999 = vst [vmem:[%s340 + $0x40] sm:$0xff] %v849
        %1000 = vst [vmem:[%s340 + $0x48] sm:$0xff] %v869
        %1001 = vst [vmem:[%s340 + $0x50] sm:$0xff] %v889
        %1002 = vst [vmem:[%s340 + $0x58] sm:$0xff] %v909
        %1003 = vst [vmem:[%s340 + $0x60] sm:$0xff] %v929
        %1004 = vst [vmem:[%s340 + $0x68] sm:$0xff] %v949
        %1005 = vst [vmem:[%s340 + $0x70] sm:$0xff] %v969
        %1006 = vst [vmem:[%s340 + $0x78] sm:$0xff] %v989
        %s1007 = sand.u32 %s165, 1
        %s1008 = scalar_lea.sflag [#allocation4], %s1007
        %s1009 = sand.u32 %s165, 1
        %s1010 = smul.addr %s1009, 128
        %s1011 = scalar_lea.vmem [#allocation11], %s1010
        // Predicated region
        $region61: #{tpu_custom_call.1} parent=39 // pred_check
          %p1012 = pneg %p175
        $region62: #{tpu_custom_call.1} parent=39 // pred_check_branch
          %1014 = sbr.rel (%p1012) target = $region64
        $region63: #{tpu_custom_call.1} parent=39 // pred_region
          %1016 = vsyncadd %s1008, 0
          %s1017 = smul.addr %s31, 16
          %s1018 = smul.addr %s30, 16
          %s1019 = sadd.s32 %s1017, %s1018
          %s1020 = smul.addr %s1019, 8
          %s1021 = scalar_lea.hbm %s5, %s1020
          %s1023 = sshll.u32 %s1011, 4
          %s1024 = int_to_ptr.vmem [resolvable:$true] %s1023
          %s1025 = sshll.u32 %s1021, 4
          %s1026 = int_to_ptr.hbm [resolvable:$true] %s1025
          %1028 = dma.vmem_to_hbm [thread:$0]  %s1024, 2048, %s1026, %s1008
        $region64: #{tpu_custom_call.1} parent=39 // pred_fallthru
          _
      $region40: #{tpu_custom_call.1} parent=5 // pred_fallthru
        _
      %p1029 = scmp.le.s32.totalorder 2, %s21
      // Predicated region
      $region65: #{tpu_custom_call.1} parent=5 // pred_check
        %p1030 = pneg %p1029
      $region66: #{tpu_custom_call.1} parent=5 // pred_check_branch
        %1032 = sbr.rel (%p1030) target = $region68
      $region67: #{tpu_custom_call.1} parent=5 // pred_region
        %s1033 = ssub.s32 %s21, 2
        // Predicated region
        $region69: #{tpu_custom_call.1} parent=67 // pred_check
          %p1034 = pneg %p181
        $region70: #{tpu_custom_call.1} parent=67 // pred_check_branch
          %1036 = sbr.rel (%p1034) target = $region72
        $region71: #{tpu_custom_call.1} parent=67 // pred_region
          %s1037 = sand.u32 %s166, 1
          %s1038 = scalar_lea.sflag [#allocation4], %s1037
          %s1039 = sand.u32 %s166, 1
          %s1040 = smul.addr %s1039, 128
          %s1041 = scalar_lea.vmem [#allocation11], %s1040
          %1043 = dma.done %s1038, 2048
        $region72: #{tpu_custom_call.1} parent=67 // pred_fallthru
          _
      $region68: #{tpu_custom_call.1} parent=5 // pred_fallthru
        _
    $region6: #{tpu_custom_call.1} parent=1 // loop_footer
      %s25 = sadd.s32 1, %s21
    $region7: #{tpu_custom_call.1} parent=1 // loop_footer_branch
      %20 = sbr.rel target = $region3
    $region8: #{tpu_custom_call.1} parent=1 // loop_exit
      _
    %1044 = vsyncpa [#allocation3], 1
    %s1045 = scalar_lea.sflag [#allocation3], 1
    %1046 = vsyncpa %s1045, 1
    %1047 = vsyncpa [#allocation6], 1
    %s1048 = scalar_lea.sflag [#allocation6], 1
    %1049 = vsyncpa %s1048, 1
    %1050 = vsyncpa [#allocation9], 1
    %1051 = vsyncpa [#allocation4], 1
    %s1052 = scalar_lea.sflag [#allocation4], 1
    %1053 = vsyncpa %s1052, 1

</llo_original>
